<compile_context>
chip_gen: v5e
topology: v5e:2x2
jax: 0.10.0
libtpu: 0.0.40
codegen_flags: <defaults>
</compile_context>

<pallas_src>
import functools

import jax
import jax.numpy as jnp
import numpy as np
from jax.experimental import pallas as pl
from jax.experimental.pallas import tpu as pltpu


def _outconv_kernel(x_ref, w_ref, b_ref, o_ref, *, use_mxu, precision):
    """Pointwise conv on one spatial tile / one c_out tile of one batch element.

    x_ref: (1, C_in, T)    w_ref: (TCO, C_in)    b_ref: (TCO, 1) f32
    o_ref: (1, TCO, T)
    """
    x = x_ref[0]                       # (C_in, T): channels in sublanes, T in lanes
    w = w_ref[...]                     # (TCO, C_in)
    b = b_ref[...]                     # (TCO, 1)

    if use_mxu:
        # Single MXU pass (bf16 x bf16 -> f32) or exact 3-pass for f32 inputs.
        y = jnp.dot(w, x, preferred_element_type=jnp.float32,
                    precision=precision) + b
    else:
        # Tiny channel counts: exact f32 rank-1 updates on the VPU (free filler
        # while HBM-bound).  Bias folded into the accumulator initialization.
        c_in = w.shape[1]
        y = b + w[:, 0:1] * x[0:1, :]
        for ci in range(1, c_in):
            y = y + w[:, ci:ci + 1] * x[ci:ci + 1, :]

    o_ref[0] = y.astype(o_ref.dtype)


def _pick_cout_tile(c_out, c_in, w_itemsize=4, max_weight_bytes=2 << 20):
    """Keep the resident weight tile O(MiB); tile C_out for very large layers."""
    if c_out * c_in * w_itemsize <= max_weight_bytes:
        return c_out
    for t in (1024, 512, 256, 128, 64, 32, 16, 8):
        if c_out % t == 0 and t * c_in * w_itemsize <= max_weight_bytes:
            return t
    return c_out                      # no clean divisor; covered by vmem_limit_bytes


def _pick_spatial_tile(dhw, n_batch, co_tiles, c_in, c_out_t,
                       x_itemsize, o_itemsize, w_tile_bytes,
                       stream_budget_bytes=8 << 20):
    """Lane-dense (128-multiple) spatial tile balancing VMEM, roofline, parallelism."""
    if dhw <= 256:
        return dhw                                       # tiny volume: full extent

    # (a) VMEM budget: double-buffered input + output streams next to the
    #     (double-buffered) weight/bias tile.  Dtype-aware.
    bytes_per_pos = 2 * (c_in * x_itemsize + c_out_t * o_itemsize)
    t_budget = (stream_budget_bytes - 2 * w_tile_bytes) // max(bytes_per_pos, 1)
    t_budget = max(128, (min(t_budget, dhw) // 128) * 128)

    # (b) Parallelism: aim for >= 16 total programs (>= 8 per TensorCore on v7x).
    want_sp = max(2, -(-16 // max(n_batch * co_tiles, 1)))
    t_par = max(128, ((dhw // want_sp) // 128) * 128)

    # (c) ...but never shrink below ~2048 lanes just for parallelism (keeps the
    #     kernel past the HBM-roofline knee on all generations).
    t = min(t_budget, max(t_par, min(2048, t_budget)))

    # (d) v7x: guarantee >= 2 programs even for N == 1, single-c_out-tile cases.
    if n_batch * co_tiles == 1 and t >= dhw:
        t = ((-(-dhw // 2) + 127) // 128) * 128

    return int(dhw if t >= dhw else t)


def out_conv(x, w, b, *, stream_budget_bytes=8 << 20):
    """1x1x1 Conv3d.  x: (N, C_in, D, H, W); w: (C_out, C_in, 1, 1, 1); b: (C_out,)."""
    N, C_in, D, H, W = x.shape
    C_out = w.shape[0]
    DHW = D * H * W
    out_dtype = x.dtype
    x_isize = jnp.dtype(x.dtype).itemsize
    o_isize = jnp.dtype(out_dtype).itemsize

    xf = x.reshape(N, C_in, DHW)                         # free reshape (NCDHW data)

    # --- c_out tiling / compute-path selection --------------------------------
    tco = _pick_cout_tile(C_out, C_in)
    co_tiles = pl.cdiv(C_out, tco)
    use_mxu = (C_in * tco > 128)

    if use_mxu and x.dtype == jnp.bfloat16:
        w2d = w.reshape(C_out, C_in).astype(jnp.bfloat16)   # single-pass MXU
        precision = jax.lax.Precision.DEFAULT
    else:
        w2d = w.reshape(C_out, C_in).astype(jnp.float32)
        precision = jax.lax.Precision.HIGHEST               # exact vs f32 reference
    b2d = b.reshape(C_out, 1).astype(jnp.float32)

    # --- spatial tiling --------------------------------------------------------
    w_tile_bytes = tco * C_in * jnp.dtype(w2d.dtype).itemsize
    T = _pick_spatial_tile(DHW, N, co_tiles, C_in, tco, x_isize, o_isize,
                           w_tile_bytes, stream_budget_bytes)
    sp_tiles = pl.cdiv(DHW, T)
    grid = (N, sp_tiles, co_tiles)       # spatial before c_out -> x tile reused

    # --- explicit VMEM limit (computed from the actual blocks, safe on v5e/v7x)
    in_blk = C_in * T * x_isize
    out_blk = tco * T * o_isize
    vmem_limit = 2 * (in_blk + out_blk + w_tile_bytes + tco * 4) + (4 << 20)
    vmem_limit = int(min(max(vmem_limit, 16 << 20), 64 << 20))

    kernel = functools.partial(_outconv_kernel, use_mxu=use_mxu,
                               precision=precision)

    out = pl.pallas_call(
        kernel,
        out_shape=jax.ShapeDtypeStruct((N, C_out, DHW), out_dtype),
        grid_spec=pltpu.PrefetchScalarGridSpec(
            num_scalar_prefetch=0,
            grid=grid,
            in_specs=[
                pl.BlockSpec((1, C_in, T), lambda n, t, co: (n, 0, t)),
                pl.BlockSpec((tco, C_in), lambda n, t, co: (co, 0)),
                pl.BlockSpec((tco, 1), lambda n, t, co: (co, 0)),
            ],
            out_specs=pl.BlockSpec((1, tco, T), lambda n, t, co: (n, co, t)),
        ),
        compiler_params=pltpu.CompilerParams(
            # Pointwise op: every grid step is independent -> all axes parallel
            # (lets v7x shard the grid across its two TensorCores).
            dimension_semantics=("parallel", "parallel", "parallel"),
            vmem_limit_bytes=vmem_limit),
    )(xf, w2d, b2d)

    return out.reshape(N, C_out, D, H, W)                # free reshape back


def init_out_conv(key, in_channels, out_channels):
    """Match nn.Conv3d(kernel_size=1) default init (uniform +/- 1/sqrt(fan_in))."""
    kw, kb = jax.random.split(key)
    bound = 1.0 / np.sqrt(in_channels)
    w = jax.random.uniform(kw, (out_channels, in_channels, 1, 1, 1),
                           jnp.float32, -bound, bound)
    b = jax.random.uniform(kb, (out_channels,), jnp.float32, -bound, bound)
    return dict(w=w, b=b)


@jax.jit
def out_conv_forward(x, params):
    return out_conv(x, params["w"], params["b"])


def _ref_out_conv(x, w, b):
    y = jax.lax.conv_general_dilated(
        x, w, window_strides=(1, 1, 1), padding=((0, 0), (0, 0), (0, 0)),
        dimension_numbers=("NCDHW", "OIDHW", "NCDHW"),
        precision=jax.lax.Precision.HIGHEST)
    return y + b.reshape(1, -1, 1, 1, 1)


if __name__ == "__main__":
    key = jax.random.PRNGKey(0)
    kx, kp, kx2, kp2 = jax.random.split(key, 4)

    # Case 1: UNet-style OutConv (small channels) -> VPU path, N=2, 2 spatial tiles.
    N, C_in, C_out, D, H, W = 2, 8, 4, 16, 16, 16
    x = jax.random.normal(kx, (N, C_in, D, H, W), jnp.float32)
    params = init_out_conv(kp, C_in, C_out)
    out = jax.block_until_ready(out_conv_forward(x, params))
    assert out.shape == (N, C_out, D, H, W)
    ref = jax.block_until_ready(_ref_out_conv(x, params["w"], params["b"]))
    np.testing.assert_allclose(np.asarray(out), np.asarray(ref),
                               atol=1e-4, rtol=1e-4)

    # Case 2: larger channels -> MXU path (f32, Precision.HIGHEST); N=1 exercises
    # the forced >= 2-program spatial split.
    N2, C_in2, C_out2, D2, H2, W2 = 1, 32, 16, 8, 8, 8
    x2 = jax.random.normal(kx2, (N2, C_in2, D2, H2, W2), jnp.float32)
    params2 = init_out_conv(kp2, C_in2, C_out2)
    out2 = jax.block_until_ready(out_conv_forward(x2, params2))
    assert out2.shape == (N2, C_out2, D2, H2, W2)
    ref2 = jax.block_until_ready(_ref_out_conv(x2, params2["w"], params2["b"]))
    np.testing.assert_allclose(np.asarray(out2), np.asarray(ref2),
                               atol=1e-4, rtol=1e-4)

    print("KERNEL_OK")
</pallas_src>

<mosaic_0001>
module attributes {stable_mosaic.version = 11 : i64} {
  func.func @_outconv_kernel(%arg0: i32, %arg1: i32, %arg2: i32, %arg3: memref<1x8x2048xf32, #tpu.memory_space<vmem>>, %arg4: memref<4x8xf32, #tpu.memory_space<vmem>>, %arg5: memref<4x1xf32, #tpu.memory_space<vmem>>, %arg6: memref<1x4x2048xf32, #tpu.memory_space<vmem>>) attributes {dimension_semantics = [#tpu.dimension_semantics<parallel>, #tpu.dimension_semantics<parallel>, #tpu.dimension_semantics<parallel>], iteration_bounds = array<i64: 2, 2, 1>, scalar_prefetch = 0 : i64, scratch_operands = 0 : i64, tpu.core_type = #tpu.core_type<tc>, window_params = [{transform_indices = @transform_0, window_bounds = array<i64: 1, 8, 2048>}, {transform_indices = @transform_1, window_bounds = array<i64: 4, 8>}, {transform_indices = @transform_2, window_bounds = array<i64: 4, 1>}, {transform_indices = @transform_3, window_bounds = array<i64: 1, 4, 2048>}]} {
    %c0 = arith.constant 0 : index
    %c0_0 = arith.constant 0 : index
    %c0_1 = arith.constant 0 : index
    %0 = vector.load %arg3[%c0, %c0_0, %c0_1] : memref<1x8x2048xf32, #tpu.memory_space<vmem>>, vector<1x8x2048xf32>
    %1 = vector.shape_cast %0 : vector<1x8x2048xf32> to vector<8x2048xf32>
    %c0_2 = arith.constant 0 : index
    %c0_3 = arith.constant 0 : index
    %2 = vector.load %arg4[%c0_2, %c0_3] : memref<4x8xf32, #tpu.memory_space<vmem>>, vector<4x8xf32>
    %c0_4 = arith.constant 0 : index
    %c0_5 = arith.constant 0 : index
    %3 = vector.load %arg5[%c0_4, %c0_5] : memref<4x1xf32, #tpu.memory_space<vmem>>, vector<4x1xf32>
    %4 = vector.extract_strided_slice %2 {offsets = [0, 0], sizes = [4, 1], strides = [1, 1]} : vector<4x8xf32> to vector<4x1xf32>
    %5 = vector.extract_strided_slice %1 {offsets = [0, 0], sizes = [1, 2048], strides = [1, 1]} : vector<8x2048xf32> to vector<1x2048xf32>
    %6 = vector.broadcast %4 : vector<4x1xf32> to vector<4x2048xf32>
    %7 = vector.broadcast %5 : vector<1x2048xf32> to vector<4x2048xf32>
    %8 = arith.mulf %6, %7 : vector<4x2048xf32>
    %9 = vector.broadcast %3 : vector<4x1xf32> to vector<4x2048xf32>
    %10 = arith.addf %9, %8 : vector<4x2048xf32>
    %11 = vector.extract_strided_slice %2 {offsets = [0, 1], sizes = [4, 1], strides = [1, 1]} : vector<4x8xf32> to vector<4x1xf32>
    %12 = vector.extract_strided_slice %1 {offsets = [1, 0], sizes = [1, 2048], strides = [1, 1]} : vector<8x2048xf32> to vector<1x2048xf32>
    %13 = vector.broadcast %11 : vector<4x1xf32> to vector<4x2048xf32>
    %14 = vector.broadcast %12 : vector<1x2048xf32> to vector<4x2048xf32>
    %15 = arith.mulf %13, %14 : vector<4x2048xf32>
    %16 = arith.addf %10, %15 : vector<4x2048xf32>
    %17 = vector.extract_strided_slice %2 {offsets = [0, 2], sizes = [4, 1], strides = [1, 1]} : vector<4x8xf32> to vector<4x1xf32>
    %18 = vector.extract_strided_slice %1 {offsets = [2, 0], sizes = [1, 2048], strides = [1, 1]} : vector<8x2048xf32> to vector<1x2048xf32>
    %19 = vector.broadcast %17 : vector<4x1xf32> to vector<4x2048xf32>
    %20 = vector.broadcast %18 : vector<1x2048xf32> to vector<4x2048xf32>
    %21 = arith.mulf %19, %20 : vector<4x2048xf32>
    %22 = arith.addf %16, %21 : vector<4x2048xf32>
    %23 = vector.extract_strided_slice %2 {offsets = [0, 3], sizes = [4, 1], strides = [1, 1]} : vector<4x8xf32> to vector<4x1xf32>
    %24 = vector.extract_strided_slice %1 {offsets = [3, 0], sizes = [1, 2048], strides = [1, 1]} : vector<8x2048xf32> to vector<1x2048xf32>
    %25 = vector.broadcast %23 : vector<4x1xf32> to vector<4x2048xf32>
    %26 = vector.broadcast %24 : vector<1x2048xf32> to vector<4x2048xf32>
    %27 = arith.mulf %25, %26 : vector<4x2048xf32>
    %28 = arith.addf %22, %27 : vector<4x2048xf32>
    %29 = vector.extract_strided_slice %2 {offsets = [0, 4], sizes = [4, 1], strides = [1, 1]} : vector<4x8xf32> to vector<4x1xf32>
    %30 = vector.extract_strided_slice %1 {offsets = [4, 0], sizes = [1, 2048], strides = [1, 1]} : vector<8x2048xf32> to vector<1x2048xf32>
    %31 = vector.broadcast %29 : vector<4x1xf32> to vector<4x2048xf32>
    %32 = vector.broadcast %30 : vector<1x2048xf32> to vector<4x2048xf32>
    %33 = arith.mulf %31, %32 : vector<4x2048xf32>
    %34 = arith.addf %28, %33 : vector<4x2048xf32>
    %35 = vector.extract_strided_slice %2 {offsets = [0, 5], sizes = [4, 1], strides = [1, 1]} : vector<4x8xf32> to vector<4x1xf32>
    %36 = vector.extract_strided_slice %1 {offsets = [5, 0], sizes = [1, 2048], strides = [1, 1]} : vector<8x2048xf32> to vector<1x2048xf32>
    %37 = vector.broadcast %35 : vector<4x1xf32> to vector<4x2048xf32>
    %38 = vector.broadcast %36 : vector<1x2048xf32> to vector<4x2048xf32>
    %39 = arith.mulf %37, %38 : vector<4x2048xf32>
    %40 = arith.addf %34, %39 : vector<4x2048xf32>
    %41 = vector.extract_strided_slice %2 {offsets = [0, 6], sizes = [4, 1], strides = [1, 1]} : vector<4x8xf32> to vector<4x1xf32>
    %42 = vector.extract_strided_slice %1 {offsets = [6, 0], sizes = [1, 2048], strides = [1, 1]} : vector<8x2048xf32> to vector<1x2048xf32>
    %43 = vector.broadcast %41 : vector<4x1xf32> to vector<4x2048xf32>
    %44 = vector.broadcast %42 : vector<1x2048xf32> to vector<4x2048xf32>
    %45 = arith.mulf %43, %44 : vector<4x2048xf32>
    %46 = arith.addf %40, %45 : vector<4x2048xf32>
    %47 = vector.extract_strided_slice %2 {offsets = [0, 7], sizes = [4, 1], strides = [1, 1]} : vector<4x8xf32> to vector<4x1xf32>
    %48 = vector.extract_strided_slice %1 {offsets = [7, 0], sizes = [1, 2048], strides = [1, 1]} : vector<8x2048xf32> to vector<1x2048xf32>
    %49 = vector.broadcast %47 : vector<4x1xf32> to vector<4x2048xf32>
    %50 = vector.broadcast %48 : vector<1x2048xf32> to vector<4x2048xf32>
    %51 = arith.mulf %49, %50 : vector<4x2048xf32>
    %52 = arith.addf %46, %51 : vector<4x2048xf32>
    %c0_6 = arith.constant 0 : index
    %c0_7 = arith.constant 0 : index
    %c0_8 = arith.constant 0 : index
    %53 = vector.load %arg6[%c0_6, %c0_7, %c0_8] : memref<1x4x2048xf32, #tpu.memory_space<vmem>>, vector<1x4x2048xf32>
    %54 = vector.shape_cast %53 : vector<1x4x2048xf32> to vector<4x2048xf32>
    %55 = vector.shape_cast %52 : vector<4x2048xf32> to vector<1x4x2048xf32>
    tpu.vector_store %arg6[%c0_6, %c0_7, %c0_8], %55 {strides = array<i32>} : memref<1x4x2048xf32, #tpu.memory_space<vmem>>, vector<1x4x2048xf32>,
    return
  }
  func.func @transform_0(%arg0: i32, %arg1: i32, %arg2: i32) -> (i32, i32, i32) {
    %c0_i32 = arith.constant 0 : i32
    %c0_i32_0 = arith.constant 0 : i32
    return %arg0, %c0_i32, %arg1 : i32, i32, i32
  }
  func.func @transform_1(%arg0: i32, %arg1: i32, %arg2: i32) -> (i32, i32) {
    %c0_i32 = arith.constant 0 : i32
    %c0_i32_0 = arith.constant 0 : i32
    return %arg2, %c0_i32 : i32, i32
  }
  func.func @transform_2(%arg0: i32, %arg1: i32, %arg2: i32) -> (i32, i32) {
    %c0_i32 = arith.constant 0 : i32
    %c0_i32_0 = arith.constant 0 : i32
    return %arg2, %c0_i32 : i32, i32
  }
  func.func @transform_3(%arg0: i32, %arg1: i32, %arg2: i32) -> (i32, i32, i32) {
    %c0_i32 = arith.constant 0 : i32
    return %arg0, %arg2, %arg1 : i32, i32, i32
  }
}

</mosaic_0001>

<llo_original>
// kernel: out_conv_forward.1
$region0: #{out_conv_forward.1}
  #allocation0 [shape = 'u32[]', space=smem, size = 0x4, offset = 0x4, fixed_abs, tag = 'smem constant byte address 0x4 - core index']
  #allocation1 [shape = 'u32[72,128]{1,0:T(1,128)}', space=vmem, size = 0x9000, scoped, tag = 'internal scratch']
  %s0 = inlined_call_operand.vmem [shape: f32[2,8,4096], index: 0, kind: input, shape index: {}]
  %s1 = inlined_call_operand.vmem [shape: f32[4,8], index: 1, kind: input, shape index: {}]
  %s2 = inlined_call_operand.vmem [shape: f32[4,1], index: 2, kind: input, shape index: {}]
  %s3 = inlined_call_operand.vmem [shape: f32[2,4,4096], index: 3, kind: output, shape index: {}]
  %s4 = sld [smem:[#allocation0]]
  $region45: #{out_conv_forward.1} parent=0
    _
  %s6 = ssub.s32 1, %s4
  %s7 = scalar_select 0, %s6, %s4
  loop: start=0, step=1, limit=6
  $region2: #{out_conv_forward.1} parent=0 // loop_pre_header
    _
  $region3: #{out_conv_forward.1} parent=0 // loop_header
    %s9 = sphi 0, %s13
    %p10 = scmp.ge.s32.totalorder %s9, 6
    %s16 = sphi 0, %s35
    %s17 = sphi 0, %s31
    %s18 = sphi 0, %s27
    %s19 = sphi 0, %s16
    %s20 = sphi 0, %s17
    %s21 = sphi 0, %s18
    %s22 = sphi 0, %s19
    %s23 = sphi 0, %s20
    %s24 = sphi 0, %s21
    %s40 = sphi 0, %s42
    %s43 = sphi 0, %s40
    %s44 = sphi 0, %s43
    %s60 = sphi 0, %s44
    %s66 = sphi 0, %s68
    %s69 = sphi 0, %s66
    %s70 = sphi 0, %s69
    %s86 = sphi 0, %s70
    %s92 = sphi 0, %s94
    %s95 = sphi 0, %s92
    %s96 = sphi 0, %s95
    %s112 = sphi 0, %s96
    %s122 = sphi 0, %s124
    %s125 = sphi 0, %s122
    %s126 = sphi 0, %s125
    %s142 = sphi 0, %s126
  $region4: #{out_conv_forward.1} parent=0 // loop_header_branch
    %12 = sbr.rel (%p10) target = $region8
  $region5: #{out_conv_forward.1} parent=0 // loop_body
    %s14 = ssub.s32 %s9, 1
    %s15 = ssub.s32 %s9, 2
    %s25 = sadd.s32 1, %s18
    %p26 = scmp.ge.s32.totalorder %s25, 1
    %s27 = scalar_select %p26, 0, %s25
    %s28 = sadd.s32 1, %s17
    %s29 = scalar_select %p26, %s28, %s17
    %p30 = scmp.ge.s32.totalorder %s29, 2
    %s31 = scalar_select %p30, 0, %s29
    %s32 = sadd.s32 1, %s16
    %s33 = scalar_select %p30, %s32, %s16
    %p34 = scmp.ge.s32.totalorder %s33, 2
    %s35 = scalar_select %p34, 0, %s33
    %s36 = ssub.s32 %s16, %s35
    %s37 = ssub.s32 %s17, %s31
    %s38 = sor.u32 %s36, %s37
    %p39 = scmp.eq.s32.totalorder %s38, 0
    %s41 = sadd.s32 %s40, 1
    %s42 = scalar_select %p39, %s40, %s41
    %p45 = pneg %p39
    %p46 = scmp.eq.s32.totalorder %s9, 3
    %p47 = por %p45, %p46
    %p48 = scmp.ne.s32.totalorder %s40, %s43
    %p49 = scmp.eq.s32.totalorder %s9, 0
    %p50 = por %p48, %p49
    %p51 = scmp.ne.s32.totalorder %s40, %s43
    %p52 = scmp.eq.s32.totalorder %s14, 3
    %p53 = por %p51, %p52
    %p54 = scmp.ne.s32.totalorder %s43, %s44
    %p55 = scmp.eq.s32.totalorder %s14, 0
    %p56 = por %p54, %p55
    %p57 = scmp.ne.s32.totalorder %s43, %s44
    %p58 = scmp.eq.s32.totalorder %s15, 3
    %p59 = por %p57, %p58
    %p61 = scmp.ne.s32.totalorder %s44, %s60
    %p62 = scmp.eq.s32.totalorder %s15, 0
    %p63 = por %p61, %p62
    %s64 = ssub.s32 %s18, %s27
    %p65 = scmp.eq.s32.totalorder %s64, 0
    %s67 = sadd.s32 %s66, 1
    %s68 = scalar_select %p65, %s66, %s67
    %p71 = pneg %p65
    %p72 = scmp.eq.s32.totalorder %s9, 3
    %p73 = por %p71, %p72
    %p74 = scmp.ne.s32.totalorder %s66, %s69
    %p75 = scmp.eq.s32.totalorder %s9, 0
    %p76 = por %p74, %p75
    %p77 = scmp.ne.s32.totalorder %s66, %s69
    %p78 = scmp.eq.s32.totalorder %s14, 3
    %p79 = por %p77, %p78
    %p80 = scmp.ne.s32.totalorder %s69, %s70
    %p81 = scmp.eq.s32.totalorder %s14, 0
    %p82 = por %p80, %p81
    %p83 = scmp.ne.s32.totalorder %s69, %s70
    %p84 = scmp.eq.s32.totalorder %s15, 3
    %p85 = por %p83, %p84
    %p87 = scmp.ne.s32.totalorder %s70, %s86
    %p88 = scmp.eq.s32.totalorder %s15, 0
    %p89 = por %p87, %p88
    %s90 = ssub.s32 %s18, %s27
    %p91 = scmp.eq.s32.totalorder %s90, 0
    %s93 = sadd.s32 %s92, 1
    %s94 = scalar_select %p91, %s92, %s93
    %p97 = pneg %p91
    %p98 = scmp.eq.s32.totalorder %s9, 3
    %p99 = por %p97, %p98
    %p100 = scmp.ne.s32.totalorder %s92, %s95
    %p101 = scmp.eq.s32.totalorder %s9, 0
    %p102 = por %p100, %p101
    %p103 = scmp.ne.s32.totalorder %s92, %s95
    %p104 = scmp.eq.s32.totalorder %s14, 3
    %p105 = por %p103, %p104
    %p106 = scmp.ne.s32.totalorder %s95, %s96
    %p107 = scmp.eq.s32.totalorder %s14, 0
    %p108 = por %p106, %p107
    %p109 = scmp.ne.s32.totalorder %s95, %s96
    %p110 = scmp.eq.s32.totalorder %s15, 3
    %p111 = por %p109, %p110
    %p113 = scmp.ne.s32.totalorder %s96, %s112
    %p114 = scmp.eq.s32.totalorder %s15, 0
    %p115 = por %p113, %p114
    %s116 = ssub.s32 %s16, %s35
    %s117 = ssub.s32 %s18, %s27
    %s118 = sor.u32 %s116, %s117
    %s119 = ssub.s32 %s17, %s31
    %s120 = sor.u32 %s118, %s119
    %p121 = scmp.eq.s32.totalorder %s120, 0
    %s123 = sadd.s32 %s122, 1
    %s124 = scalar_select %p121, %s122, %s123
    %p127 = pneg %p121
    %p128 = scmp.eq.s32.totalorder %s9, 3
    %p129 = por %p127, %p128
    %p130 = scmp.ne.s32.totalorder %s122, %s125
    %p131 = scmp.eq.s32.totalorder %s9, 0
    %p132 = por %p130, %p131
    %p133 = scmp.ne.s32.totalorder %s122, %s125
    %p134 = scmp.eq.s32.totalorder %s14, 3
    %p135 = por %p133, %p134
    %p136 = scmp.ne.s32.totalorder %s125, %s126
    %p137 = scmp.eq.s32.totalorder %s14, 0
    %p138 = por %p136, %p137
    %p139 = scmp.ne.s32.totalorder %s125, %s126
    %p140 = scmp.eq.s32.totalorder %s15, 3
    %p141 = por %p139, %p140
    %p143 = scmp.ne.s32.totalorder %s126, %s142
    %p144 = scmp.eq.s32.totalorder %s15, 0
    %p145 = por %p143, %p144
    %p146 = scmp.le.s32.totalorder 1, %s9
    %p147 = scmp.lt.s32.totalorder %s9, 5
    %p148 = pnand %p146, %p147
    %p149 = pneg %p148
    // Predicated region
    $region9: #{out_conv_forward.1} parent=5 // pred_check
      _
    $region10: #{out_conv_forward.1} parent=5 // pred_check_branch
      %151 = sbr.rel (%p148) target = $region12
    $region11: #{out_conv_forward.1} parent=5 // pred_region
      %s152 = ssub.s32 %s9, 1
      // Predicated region
      $region13: #{out_conv_forward.1} parent=11 // pred_check
        %p153 = pneg %p82
      $region14: #{out_conv_forward.1} parent=11 // pred_check_branch
        %155 = sbr.rel (%p153) target = $region16
      $region15: #{out_conv_forward.1} parent=11 // pred_region
        %p156 = scmp.lt.s32.totalorder %s21, 0
        %s157 = scalar_select %p156, %s21, 0
        %s158 = smul.addr %s157, 4
        %s159 = scalar_lea.vmem %s1, %s158
      $region16: #{out_conv_forward.1} parent=11 // pred_fallthru
        _
      // Predicated region
      $region17: #{out_conv_forward.1} parent=11 // pred_check
        %p160 = pneg %p108
      $region18: #{out_conv_forward.1} parent=11 // pred_check_branch
        %162 = sbr.rel (%p160) target = $region20
      $region19: #{out_conv_forward.1} parent=11 // pred_region
        %p163 = scmp.lt.s32.totalorder %s21, 0
        %s164 = scalar_select %p163, %s21, 0
        %s165 = smul.addr %s164, 4
        %s166 = scalar_lea.vmem %s2, %s165
      $region20: #{out_conv_forward.1} parent=11 // pred_fallthru
        _
    $region12: #{out_conv_forward.1} parent=5 // pred_fallthru
      _
    %p167 = scmp.lt.s32.totalorder %s9, 4
    // Predicated region
    $region21: #{out_conv_forward.1} parent=5 // pred_check
      %p168 = pneg %p167
    $region22: #{out_conv_forward.1} parent=5 // pred_check_branch
      %170 = sbr.rel (%p168) target = $region24
    $region23: #{out_conv_forward.1} parent=5 // pred_region
      // Predicated region
      $region25: #{out_conv_forward.1} parent=23 // pred_check
        %p171 = pneg %p50
      $region26: #{out_conv_forward.1} parent=23 // pred_check_branch
        %173 = sbr.rel (%p171) target = $region28
      $region27: #{out_conv_forward.1} parent=23 // pred_region
        %s174 = smul.u32 16, %s17
        %p175 = scmp.lt.s32.totalorder %s16, 1
        %s176 = scalar_select %p175, %s16, 1
        %p177 = scmp.lt.s32.totalorder %s174, 31
        %s178 = scalar_select %p177, %s174, 31
        %s179 = smul.addr %s176, 32
        %s180 = sadd.s32 %s178, %s179
        %s181 = smul.addr %s180, 8
        %s182 = scalar_lea.vmem %s0, %s181
        %s183 = smul.u32 16, %s17
      $region28: #{out_conv_forward.1} parent=23 // pred_fallthru
        _
    $region24: #{out_conv_forward.1} parent=5 // pred_fallthru
      _
    %p184 = scmp.le.s32.totalorder 1, %s9
    %p185 = scmp.lt.s32.totalorder %s9, 5
    %p186 = pnand %p184, %p185
    %p187 = pneg %p186
    // Predicated region
    $region29: #{out_conv_forward.1} parent=5 // pred_check
      _
    $region30: #{out_conv_forward.1} parent=5 // pred_check_branch
      %189 = sbr.rel (%p186) target = $region32
    $region31: #{out_conv_forward.1} parent=5 // pred_region
      %s190 = ssub.s32 %s9, 1
      %s191 = smul.u32 16, %s20
      %p192 = scmp.lt.s32.totalorder %s19, 1
      %s193 = scalar_select %p192, %s19, 1
      %p194 = scmp.lt.s32.totalorder %s191, 31
      %s195 = scalar_select %p194, %s191, 31
      %s196 = smul.addr %s193, 32
      %s197 = sadd.s32 %s195, %s196
      %s198 = smul.addr %s197, 8
      %s199 = scalar_lea.vmem %s0, %s198
      %p200 = pneg %p56
      %p201 = pneg %p53
      %p202 = scmp.lt.s32.totalorder %s21, 0
      %s203 = scalar_select %p202, %s21, 0
      %s204 = smul.addr %s203, 4
      %s205 = scalar_lea.vmem %s1, %s204
      %p206 = pneg %p82
      %p207 = pneg %p79
      %p208 = scmp.lt.s32.totalorder %s21, 0
      %s209 = scalar_select %p208, %s21, 0
      %s210 = smul.addr %s209, 4
      %s211 = scalar_lea.vmem %s2, %s210
      %p212 = pneg %p108
      %p213 = pneg %p105
      %p214 = pneg %p138
      %p215 = pneg %p135
      %s216 = smul.u32 16, %s20
      %p217 = scmp.lt.s32.totalorder %s19, 1
      %s218 = scalar_select %p217, %s19, 1
      %p219 = scmp.lt.s32.totalorder %s21, 0
      %s220 = scalar_select %p219, %s21, 0
      %p221 = scmp.lt.s32.totalorder %s216, 31
      %s222 = scalar_select %p221, %s216, 31
      %s223 = smul.addr %s220, 32
      %s224 = sadd.s32 %s222, %s223
      %s225 = smul.addr %s218, 32
      %s226 = sadd.s32 %s224, %s225
      %s227 = smul.addr %s226, 4
      %s228 = scalar_lea.vmem %s3, %s227
      %s229 = smul.u32 16, %s20
      %p230 = scmp.lt.s32.totalorder %s19, 1
      %s231 = scalar_select %p230, %s19, 1
      %p232 = scmp.lt.s32.totalorder %s229, 31
      %s233 = scalar_select %p232, %s229, 31
      %s234 = smul.addr %s231, 32
      %s235 = sadd.s32 %s233, %s234
      %s236 = smul.addr %s235, 8
      %s237 = scalar_lea.vmem %s0, %s236
      %s238 = smul.u32 16, %s20
      %p239 = scmp.lt.s32.totalorder %s21, 0
      %s240 = scalar_select %p239, %s21, 0
      %s241 = smul.addr %s240, 4
      %s242 = scalar_lea.vmem %s1, %s241
      %p243 = scmp.lt.s32.totalorder %s21, 0
      %s244 = scalar_select %p243, %s21, 0
      %s245 = smul.addr %s244, 4
      %s246 = scalar_lea.vmem %s2, %s245
      %s247 = smul.u32 16, %s20
      %p248 = scmp.lt.s32.totalorder %s19, 1
      %s249 = scalar_select %p248, %s19, 1
      %p250 = scmp.lt.s32.totalorder %s21, 0
      %s251 = scalar_select %p250, %s21, 0
      %p252 = scmp.lt.s32.totalorder %s247, 31
      %s253 = scalar_select %p252, %s247, 31
      %s254 = smul.addr %s251, 32
      %s255 = sadd.s32 %s253, %s254
      %s256 = smul.addr %s249, 32
      %s257 = sadd.s32 %s255, %s256
      %s258 = smul.addr %s257, 4
      %s259 = scalar_lea.vmem %s3, %s258
      %s260 = smul.u32 16, %s20
      %v261 = vld [vmem:[%s237] sm:$0xff]
      %v262 = vld [vmem:[%s237 + $0x8] sm:$0xff]
      %v263 = vld [vmem:[%s237 + $0x10] sm:$0xff]
      %v264 = vld [vmem:[%s237 + $0x18] sm:$0xff]
      %v265 = vld [vmem:[%s237 + $0x20] sm:$0xff]
      %v266 = vld [vmem:[%s237 + $0x28] sm:$0xff]
      %v267 = vld [vmem:[%s237 + $0x30] sm:$0xff]
      %v268 = vld [vmem:[%s237 + $0x38] sm:$0xff]
      %v269 = vld [vmem:[%s237 + $0x40] sm:$0xff]
      %v270 = vld [vmem:[%s237 + $0x48] sm:$0xff]
      %v271 = vld [vmem:[%s237 + $0x50] sm:$0xff]
      %v272 = vld [vmem:[%s237 + $0x58] sm:$0xff]
      %v273 = vld [vmem:[%s237 + $0x60] sm:$0xff]
      %v274 = vld [vmem:[%s237 + $0x68] sm:$0xff]
      %v275 = vld [vmem:[%s237 + $0x70] sm:$0xff]
      %v276 = vld [vmem:[%s237 + $0x78] sm:$0xff]
      %v277 = vld [vmem:[%s242] sm:$0xf]
      %v278 = vld [vmem:[%s246] sm:$0xf]
      %280 = vset.pattern.permute.xlu0 0
      %281 = vperm.xlu0 %280, %v277
      %v282 = vpop.permute.xlu0 %281
      %v284 = vperm.slane %v261, 0
      %v285 = vperm.slane %v262, 0
      %v286 = vperm.slane %v263, 0
      %v287 = vperm.slane %v264, 0
      %v288 = vperm.slane %v265, 0
      %v289 = vperm.slane %v266, 0
      %v290 = vperm.slane %v267, 0
      %v291 = vperm.slane %v268, 0
      %v292 = vperm.slane %v269, 0
      %v293 = vperm.slane %v270, 0
      %v294 = vperm.slane %v271, 0
      %v295 = vperm.slane %v272, 0
      %v296 = vperm.slane %v273, 0
      %v297 = vperm.slane %v274, 0
      %v298 = vperm.slane %v275, 0
      %v299 = vperm.slane %v276, 0
      %v300 = vmul.f32 %v282, %v284
      %v301 = vmul.f32 %v282, %v285
      %v302 = vmul.f32 %v282, %v286
      %v303 = vmul.f32 %v282, %v287
      %v304 = vmul.f32 %v282, %v288
      %v305 = vmul.f32 %v282, %v289
      %v306 = vmul.f32 %v282, %v290
      %v307 = vmul.f32 %v282, %v291
      %v308 = vmul.f32 %v282, %v292
      %v309 = vmul.f32 %v282, %v293
      %v310 = vmul.f32 %v282, %v294
      %v311 = vmul.f32 %v282, %v295
      %v312 = vmul.f32 %v282, %v296
      %v313 = vmul.f32 %v282, %v297
      %v314 = vmul.f32 %v282, %v298
      %v315 = vmul.f32 %v282, %v299
      %317 = vset.pattern.permute.xlu0 0
      %318 = vperm.xlu0 %317, %v278
      %v319 = vpop.permute.xlu0 %318
      %v321 = vadd.f32 %v319, %v300
      %v322 = vadd.f32 %v319, %v301
      %v323 = vadd.f32 %v319, %v302
      %v324 = vadd.f32 %v319, %v303
      %v325 = vadd.f32 %v319, %v304
      %v326 = vadd.f32 %v319, %v305
      %v327 = vadd.f32 %v319, %v306
      %v328 = vadd.f32 %v319, %v307
      %v329 = vadd.f32 %v319, %v308
      %v330 = vadd.f32 %v319, %v309
      %v331 = vadd.f32 %v319, %v310
      %v332 = vadd.f32 %v319, %v311
      %v333 = vadd.f32 %v319, %v312
      %v334 = vadd.f32 %v319, %v313
      %v335 = vadd.f32 %v319, %v314
      %v336 = vadd.f32 %v319, %v315
      %337 = vset.pattern.permute.xlu0 1
      %338 = vperm.xlu0 %337, %v277
      %v339 = vpop.permute.xlu0 %338
      %v341 = vperm.slane %v261, 1
      %v342 = vperm.slane %v262, 1
      %v343 = vperm.slane %v263, 1
      %v344 = vperm.slane %v264, 1
      %v345 = vperm.slane %v265, 1
      %v346 = vperm.slane %v266, 1
      %v347 = vperm.slane %v267, 1
      %v348 = vperm.slane %v268, 1
      %v349 = vperm.slane %v269, 1
      %v350 = vperm.slane %v270, 1
      %v351 = vperm.slane %v271, 1
      %v352 = vperm.slane %v272, 1
      %v353 = vperm.slane %v273, 1
      %v354 = vperm.slane %v274, 1
      %v355 = vperm.slane %v275, 1
      %v356 = vperm.slane %v276, 1
      %v357 = vmul.f32 %v339, %v341
      %v358 = vmul.f32 %v339, %v342
      %v359 = vmul.f32 %v339, %v343
      %v360 = vmul.f32 %v339, %v344
      %v361 = vmul.f32 %v339, %v345
      %v362 = vmul.f32 %v339, %v346
      %v363 = vmul.f32 %v339, %v347
      %v364 = vmul.f32 %v339, %v348
      %v365 = vmul.f32 %v339, %v349
      %v366 = vmul.f32 %v339, %v350
      %v367 = vmul.f32 %v339, %v351
      %v368 = vmul.f32 %v339, %v352
      %v369 = vmul.f32 %v339, %v353
      %v370 = vmul.f32 %v339, %v354
      %v371 = vmul.f32 %v339, %v355
      %v372 = vmul.f32 %v339, %v356
      %v373 = vadd.f32 %v321, %v357
      %v374 = vadd.f32 %v322, %v358
      %v375 = vadd.f32 %v323, %v359
      %v376 = vadd.f32 %v324, %v360
      %v377 = vadd.f32 %v325, %v361
      %v378 = vadd.f32 %v326, %v362
      %v379 = vadd.f32 %v327, %v363
      %v380 = vadd.f32 %v328, %v364
      %v381 = vadd.f32 %v329, %v365
      %v382 = vadd.f32 %v330, %v366
      %v383 = vadd.f32 %v331, %v367
      %v384 = vadd.f32 %v332, %v368
      %v385 = vadd.f32 %v333, %v369
      %v386 = vadd.f32 %v334, %v370
      %v387 = vadd.f32 %v335, %v371
      %v388 = vadd.f32 %v336, %v372
      %389 = vset.pattern.permute.xlu0 2
      %390 = vperm.xlu0 %389, %v277
      %v391 = vpop.permute.xlu0 %390
      %v393 = vperm.slane %v261, 2
      %v394 = vperm.slane %v262, 2
      %v395 = vperm.slane %v263, 2
      %v396 = vperm.slane %v264, 2
      %v397 = vperm.slane %v265, 2
      %v398 = vperm.slane %v266, 2
      %v399 = vperm.slane %v267, 2
      %v400 = vperm.slane %v268, 2
      %v401 = vperm.slane %v269, 2
      %v402 = vperm.slane %v270, 2
      %v403 = vperm.slane %v271, 2
      %v404 = vperm.slane %v272, 2
      %v405 = vperm.slane %v273, 2
      %v406 = vperm.slane %v274, 2
      %v407 = vperm.slane %v275, 2
      %v408 = vperm.slane %v276, 2
      %v409 = vmul.f32 %v391, %v393
      %v410 = vmul.f32 %v391, %v394
      %v411 = vmul.f32 %v391, %v395
      %v412 = vmul.f32 %v391, %v396
      %v413 = vmul.f32 %v391, %v397
      %v414 = vmul.f32 %v391, %v398
      %v415 = vmul.f32 %v391, %v399
      %v416 = vmul.f32 %v391, %v400
      %v417 = vmul.f32 %v391, %v401
      %v418 = vmul.f32 %v391, %v402
      %v419 = vmul.f32 %v391, %v403
      %v420 = vmul.f32 %v391, %v404
      %v421 = vmul.f32 %v391, %v405
      %v422 = vmul.f32 %v391, %v406
      %v423 = vmul.f32 %v391, %v407
      %v424 = vmul.f32 %v391, %v408
      %v425 = vadd.f32 %v373, %v409
      %v426 = vadd.f32 %v374, %v410
      %v427 = vadd.f32 %v375, %v411
      %v428 = vadd.f32 %v376, %v412
      %v429 = vadd.f32 %v377, %v413
      %v430 = vadd.f32 %v378, %v414
      %v431 = vadd.f32 %v379, %v415
      %v432 = vadd.f32 %v380, %v416
      %v433 = vadd.f32 %v381, %v417
      %v434 = vadd.f32 %v382, %v418
      %v435 = vadd.f32 %v383, %v419
      %v436 = vadd.f32 %v384, %v420
      %v437 = vadd.f32 %v385, %v421
      %v438 = vadd.f32 %v386, %v422
      %v439 = vadd.f32 %v387, %v423
      %v440 = vadd.f32 %v388, %v424
      %441 = vset.pattern.permute.xlu0 3
      %442 = vperm.xlu0 %441, %v277
      %v443 = vpop.permute.xlu0 %442
      %v445 = vperm.slane %v261, 3
      %v446 = vperm.slane %v262, 3
      %v447 = vperm.slane %v263, 3
      %v448 = vperm.slane %v264, 3
      %v449 = vperm.slane %v265, 3
      %v450 = vperm.slane %v266, 3
      %v451 = vperm.slane %v267, 3
      %v452 = vperm.slane %v268, 3
      %v453 = vperm.slane %v269, 3
      %v454 = vperm.slane %v270, 3
      %v455 = vperm.slane %v271, 3
      %v456 = vperm.slane %v272, 3
      %v457 = vperm.slane %v273, 3
      %v458 = vperm.slane %v274, 3
      %v459 = vperm.slane %v275, 3
      %v460 = vperm.slane %v276, 3
      %v461 = vmul.f32 %v443, %v445
      %v462 = vmul.f32 %v443, %v446
      %v463 = vmul.f32 %v443, %v447
      %v464 = vmul.f32 %v443, %v448
      %v465 = vmul.f32 %v443, %v449
      %v466 = vmul.f32 %v443, %v450
      %v467 = vmul.f32 %v443, %v451
      %v468 = vmul.f32 %v443, %v452
      %v469 = vmul.f32 %v443, %v453
      %v470 = vmul.f32 %v443, %v454
      %v471 = vmul.f32 %v443, %v455
      %v472 = vmul.f32 %v443, %v456
      %v473 = vmul.f32 %v443, %v457
      %v474 = vmul.f32 %v443, %v458
      %v475 = vmul.f32 %v443, %v459
      %v476 = vmul.f32 %v443, %v460
      %v477 = vadd.f32 %v425, %v461
      %v478 = vadd.f32 %v426, %v462
      %v479 = vadd.f32 %v427, %v463
      %v480 = vadd.f32 %v428, %v464
      %v481 = vadd.f32 %v429, %v465
      %v482 = vadd.f32 %v430, %v466
      %v483 = vadd.f32 %v431, %v467
      %v484 = vadd.f32 %v432, %v468
      %v485 = vadd.f32 %v433, %v469
      %v486 = vadd.f32 %v434, %v470
      %v487 = vadd.f32 %v435, %v471
      %v488 = vadd.f32 %v436, %v472
      %v489 = vadd.f32 %v437, %v473
      %v490 = vadd.f32 %v438, %v474
      %v491 = vadd.f32 %v439, %v475
      %v492 = vadd.f32 %v440, %v476
      %493 = vset.pattern.permute.xlu0 4
      %494 = vperm.xlu0 %493, %v277
      %v495 = vpop.permute.xlu0 %494
      %v497 = vperm.slane %v261, 4
      %v498 = vperm.slane %v262, 4
      %v499 = vperm.slane %v263, 4
      %v500 = vperm.slane %v264, 4
      %v501 = vperm.slane %v265, 4
      %v502 = vperm.slane %v266, 4
      %v503 = vperm.slane %v267, 4
      %v504 = vperm.slane %v268, 4
      %v505 = vperm.slane %v269, 4
      %v506 = vperm.slane %v270, 4
      %v507 = vperm.slane %v271, 4
      %v508 = vperm.slane %v272, 4
      %v509 = vperm.slane %v273, 4
      %v510 = vperm.slane %v274, 4
      %v511 = vperm.slane %v275, 4
      %v512 = vperm.slane %v276, 4
      %v513 = vmul.f32 %v495, %v497
      %v514 = vmul.f32 %v495, %v498
      %v515 = vmul.f32 %v495, %v499
      %v516 = vmul.f32 %v495, %v500
      %v517 = vmul.f32 %v495, %v501
      %v518 = vmul.f32 %v495, %v502
      %v519 = vmul.f32 %v495, %v503
      %v520 = vmul.f32 %v495, %v504
      %v521 = vmul.f32 %v495, %v505
      %v522 = vmul.f32 %v495, %v506
      %v523 = vmul.f32 %v495, %v507
      %v524 = vmul.f32 %v495, %v508
      %v525 = vmul.f32 %v495, %v509
      %v526 = vmul.f32 %v495, %v510
      %v527 = vmul.f32 %v495, %v511
      %v528 = vmul.f32 %v495, %v512
      %v529 = vadd.f32 %v477, %v513
      %v530 = vadd.f32 %v478, %v514
      %v531 = vadd.f32 %v479, %v515
      %v532 = vadd.f32 %v480, %v516
      %v533 = vadd.f32 %v481, %v517
      %v534 = vadd.f32 %v482, %v518
      %v535 = vadd.f32 %v483, %v519
      %v536 = vadd.f32 %v484, %v520
      %v537 = vadd.f32 %v485, %v521
      %v538 = vadd.f32 %v486, %v522
      %v539 = vadd.f32 %v487, %v523
      %v540 = vadd.f32 %v488, %v524
      %v541 = vadd.f32 %v489, %v525
      %v542 = vadd.f32 %v490, %v526
      %v543 = vadd.f32 %v491, %v527
      %v544 = vadd.f32 %v492, %v528
      %545 = vset.pattern.permute.xlu0 5
      %546 = vperm.xlu0 %545, %v277
      %v547 = vpop.permute.xlu0 %546
      %v549 = vperm.slane %v261, 5
      %v550 = vperm.slane %v262, 5
      %v551 = vperm.slane %v263, 5
      %v552 = vperm.slane %v264, 5
      %v553 = vperm.slane %v265, 5
      %v554 = vperm.slane %v266, 5
      %v555 = vperm.slane %v267, 5
      %v556 = vperm.slane %v268, 5
      %v557 = vperm.slane %v269, 5
      %v558 = vperm.slane %v270, 5
      %v559 = vperm.slane %v271, 5
      %v560 = vperm.slane %v272, 5
      %v561 = vperm.slane %v273, 5
      %v562 = vperm.slane %v274, 5
      %v563 = vperm.slane %v275, 5
      %v564 = vperm.slane %v276, 5
      %v565 = vmul.f32 %v547, %v549
      %v566 = vmul.f32 %v547, %v550
      %v567 = vmul.f32 %v547, %v551
      %v568 = vmul.f32 %v547, %v552
      %v569 = vmul.f32 %v547, %v553
      %v570 = vmul.f32 %v547, %v554
      %v571 = vmul.f32 %v547, %v555
      %v572 = vmul.f32 %v547, %v556
      %v573 = vmul.f32 %v547, %v557
      %v574 = vmul.f32 %v547, %v558
      %v575 = vmul.f32 %v547, %v559
      %v576 = vmul.f32 %v547, %v560
      %v577 = vmul.f32 %v547, %v561
      %v578 = vmul.f32 %v547, %v562
      %v579 = vmul.f32 %v547, %v563
      %v580 = vmul.f32 %v547, %v564
      %v581 = vadd.f32 %v529, %v565
      %v582 = vadd.f32 %v530, %v566
      %v583 = vadd.f32 %v531, %v567
      %v584 = vadd.f32 %v532, %v568
      %v585 = vadd.f32 %v533, %v569
      %v586 = vadd.f32 %v534, %v570
      %v587 = vadd.f32 %v535, %v571
      %v588 = vadd.f32 %v536, %v572
      %v589 = vadd.f32 %v537, %v573
      %v590 = vadd.f32 %v538, %v574
      %v591 = vadd.f32 %v539, %v575
      %v592 = vadd.f32 %v540, %v576
      %v593 = vadd.f32 %v541, %v577
      %v594 = vadd.f32 %v542, %v578
      %v595 = vadd.f32 %v543, %v579
      %v596 = vadd.f32 %v544, %v580
      %597 = vset.pattern.permute.xlu0 6
      %598 = vperm.xlu0 %597, %v277
      %v599 = vpop.permute.xlu0 %598
      %v601 = vperm.slane %v261, 6
      %v602 = vperm.slane %v262, 6
      %v603 = vperm.slane %v263, 6
      %v604 = vperm.slane %v264, 6
      %v605 = vperm.slane %v265, 6
      %v606 = vperm.slane %v266, 6
      %v607 = vperm.slane %v267, 6
      %v608 = vperm.slane %v268, 6
      %v609 = vperm.slane %v269, 6
      %v610 = vperm.slane %v270, 6
      %v611 = vperm.slane %v271, 6
      %v612 = vperm.slane %v272, 6
      %v613 = vperm.slane %v273, 6
      %v614 = vperm.slane %v274, 6
      %v615 = vperm.slane %v275, 6
      %v616 = vperm.slane %v276, 6
      %v617 = vmul.f32 %v599, %v601
      %v618 = vmul.f32 %v599, %v602
      %v619 = vmul.f32 %v599, %v603
      %v620 = vmul.f32 %v599, %v604
      %v621 = vmul.f32 %v599, %v605
      %v622 = vmul.f32 %v599, %v606
      %v623 = vmul.f32 %v599, %v607
      %v624 = vmul.f32 %v599, %v608
      %v625 = vmul.f32 %v599, %v609
      %v626 = vmul.f32 %v599, %v610
      %v627 = vmul.f32 %v599, %v611
      %v628 = vmul.f32 %v599, %v612
      %v629 = vmul.f32 %v599, %v613
      %v630 = vmul.f32 %v599, %v614
      %v631 = vmul.f32 %v599, %v615
      %v632 = vmul.f32 %v599, %v616
      %v633 = vadd.f32 %v581, %v617
      %v634 = vadd.f32 %v582, %v618
      %v635 = vadd.f32 %v583, %v619
      %v636 = vadd.f32 %v584, %v620
      %v637 = vadd.f32 %v585, %v621
      %v638 = vadd.f32 %v586, %v622
      %v639 = vadd.f32 %v587, %v623
      %v640 = vadd.f32 %v588, %v624
      %v641 = vadd.f32 %v589, %v625
      %v642 = vadd.f32 %v590, %v626
      %v643 = vadd.f32 %v591, %v627
      %v644 = vadd.f32 %v592, %v628
      %v645 = vadd.f32 %v593, %v629
      %v646 = vadd.f32 %v594, %v630
      %v647 = vadd.f32 %v595, %v631
      %v648 = vadd.f32 %v596, %v632
      %649 = vset.pattern.permute.xlu0 7
      %650 = vperm.xlu0 %649, %v277
      %v651 = vpop.permute.xlu0 %650
      %v653 = vperm.slane %v261, 7
      %v654 = vperm.slane %v262, 7
      %v655 = vperm.slane %v263, 7
      %v656 = vperm.slane %v264, 7
      %v657 = vperm.slane %v265, 7
      %v658 = vperm.slane %v266, 7
      %v659 = vperm.slane %v267, 7
      %v660 = vperm.slane %v268, 7
      %v661 = vperm.slane %v269, 7
      %v662 = vperm.slane %v270, 7
      %v663 = vperm.slane %v271, 7
      %v664 = vperm.slane %v272, 7
      %v665 = vperm.slane %v273, 7
      %v666 = vperm.slane %v274, 7
      %v667 = vperm.slane %v275, 7
      %v668 = vperm.slane %v276, 7
      %v669 = vmul.f32 %v651, %v653
      %v670 = vmul.f32 %v651, %v654
      %v671 = vmul.f32 %v651, %v655
      %v672 = vmul.f32 %v651, %v656
      %v673 = vmul.f32 %v651, %v657
      %v674 = vmul.f32 %v651, %v658
      %v675 = vmul.f32 %v651, %v659
      %v676 = vmul.f32 %v651, %v660
      %v677 = vmul.f32 %v651, %v661
      %v678 = vmul.f32 %v651, %v662
      %v679 = vmul.f32 %v651, %v663
      %v680 = vmul.f32 %v651, %v664
      %v681 = vmul.f32 %v651, %v665
      %v682 = vmul.f32 %v651, %v666
      %v683 = vmul.f32 %v651, %v667
      %v684 = vmul.f32 %v651, %v668
      %v685 = vadd.f32 %v633, %v669
      %v686 = vadd.f32 %v634, %v670
      %v687 = vadd.f32 %v635, %v671
      %v688 = vadd.f32 %v636, %v672
      %v689 = vadd.f32 %v637, %v673
      %v690 = vadd.f32 %v638, %v674
      %v691 = vadd.f32 %v639, %v675
      %v692 = vadd.f32 %v640, %v676
      %v693 = vadd.f32 %v641, %v677
      %v694 = vadd.f32 %v642, %v678
      %v695 = vadd.f32 %v643, %v679
      %v696 = vadd.f32 %v644, %v680
      %v697 = vadd.f32 %v645, %v681
      %v698 = vadd.f32 %v646, %v682
      %v699 = vadd.f32 %v647, %v683
      %v700 = vadd.f32 %v648, %v684
      %v717 = vrot.slane %v686, 4
      %v718 = vrot.slane %v688, 4
      %v719 = vrot.slane %v690, 4
      %v720 = vrot.slane %v692, 4
      %v721 = vrot.slane %v694, 4
      %v722 = vrot.slane %v696, 4
      %v723 = vrot.slane %v698, 4
      %v724 = vrot.slane %v700, 4
      %vm725 = vcmask 1043456
      %v726 = vsel %vm725, %v685, %v717
      %v727 = vsel %vm725, %v687, %v718
      %v728 = vsel %vm725, %v689, %v719
      %v729 = vsel %vm725, %v691, %v720
      %v730 = vsel %vm725, %v693, %v721
      %v731 = vsel %vm725, %v695, %v722
      %v732 = vsel %vm725, %v697, %v723
      %v733 = vsel %vm725, %v699, %v724
      %742 = vst [vmem:[%s259] sm:$0xff] %v726
      %743 = vst [vmem:[%s259 + $0x8] sm:$0xff] %v727
      %744 = vst [vmem:[%s259 + $0x10] sm:$0xff] %v728
      %745 = vst [vmem:[%s259 + $0x18] sm:$0xff] %v729
      %746 = vst [vmem:[%s259 + $0x20] sm:$0xff] %v730
      %747 = vst [vmem:[%s259 + $0x28] sm:$0xff] %v731
      %748 = vst [vmem:[%s259 + $0x30] sm:$0xff] %v732
      %749 = vst [vmem:[%s259 + $0x38] sm:$0xff] %v733
      %s750 = smul.u32 16, %s20
      %p751 = scmp.lt.s32.totalorder %s19, 1
      %s752 = scalar_select %p751, %s19, 1
      %p753 = scmp.lt.s32.totalorder %s21, 0
      %s754 = scalar_select %p753, %s21, 0
      %p755 = scmp.lt.s32.totalorder %s750, 31
      %s756 = scalar_select %p755, %s750, 31
      %s757 = smul.addr %s754, 32
      %s758 = sadd.s32 %s756, %s757
      %s759 = smul.addr %s752, 32
      %s760 = sadd.s32 %s758, %s759
      %s761 = smul.addr %s760, 4
      %s762 = scalar_lea.vmem %s3, %s761
      // Predicated region
      $region33: #{out_conv_forward.1} parent=31 // pred_check
        %p763 = pneg %p135
      $region34: #{out_conv_forward.1} parent=31 // pred_check_branch
        %765 = sbr.rel (%p763) target = $region36
      $region35: #{out_conv_forward.1} parent=31 // pred_region
        %s766 = smul.u32 16, %s20
      $region36: #{out_conv_forward.1} parent=31 // pred_fallthru
        _
    $region32: #{out_conv_forward.1} parent=5 // pred_fallthru
      _
    %p767 = scmp.le.s32.totalorder 2, %s9
    // Predicated region
    $region37: #{out_conv_forward.1} parent=5 // pred_check
      %p768 = pneg %p767
    $region38: #{out_conv_forward.1} parent=5 // pred_check_branch
      %770 = sbr.rel (%p768) target = $region40
    $region39: #{out_conv_forward.1} parent=5 // pred_region
      %s771 = ssub.s32 %s9, 2
      // Predicated region
      $region41: #{out_conv_forward.1} parent=39 // pred_check
        %p772 = pneg %p141
      $region42: #{out_conv_forward.1} parent=39 // pred_check_branch
        %774 = sbr.rel (%p772) target = $region44
      $region43: #{out_conv_forward.1} parent=39 // pred_region
        %s775 = smul.u32 16, %s23
        %p776 = scmp.lt.s32.totalorder %s22, 1
        %s777 = scalar_select %p776, %s22, 1
        %p778 = scmp.lt.s32.totalorder %s24, 0
        %s779 = scalar_select %p778, %s24, 0
        %p780 = scmp.lt.s32.totalorder %s775, 31
        %s781 = scalar_select %p780, %s775, 31
        %s782 = smul.addr %s779, 32
        %s783 = sadd.s32 %s781, %s782
        %s784 = smul.addr %s777, 32
        %s785 = sadd.s32 %s783, %s784
        %s786 = smul.addr %s785, 4
        %s787 = scalar_lea.vmem %s3, %s786
      $region44: #{out_conv_forward.1} parent=39 // pred_fallthru
        _
    $region40: #{out_conv_forward.1} parent=5 // pred_fallthru
      _
  $region6: #{out_conv_forward.1} parent=0 // loop_footer
    %s13 = sadd.s32 1, %s9
  $region7: #{out_conv_forward.1} parent=0 // loop_footer_branch
    %8 = sbr.rel target = $region3
  $region8: #{out_conv_forward.1} parent=0 // loop_exit
    _

</llo_original>
